<compile_context>
chip_gen: v7x
topology: tpu7x:2x2x1
jax: 0.10.0
libtpu: 0.0.40
codegen_flags: <defaults>
</compile_context>

<pallas_src>
import functools
import random

import numpy as np
import jax
import jax.numpy as jnp
from jax import lax
from jax.experimental import pallas as pl
from jax.experimental.pallas import tpu as pltpu

MODE_TIME, MODE_FREQ = 0, 1


# ----------------------------------------------------------------------------
# Kernel bodies (shared between the gridless single-sample and batched variants)
# ----------------------------------------------------------------------------
def _make_mask_kernel(mode, num_masks, batched):
    """Zero `num_masks` column (time) or row (freq) bands of one (V, TAU) tile.

    params_ref: SMEM int32[B, 2*num_masks] = (start0, len0, start1, len1, ...)
    x_ref / o_ref: (V, TAU) VMEM tile (batch dim squeezed out by the BlockSpec).
    """
    def kernel(params_ref, x_ref, o_ref):
        b = pl.program_id(0) if batched else 0
        x = x_ref[...]
        V, TAU = x.shape
        if mode == MODE_TIME:
            idx = lax.broadcasted_iota(jnp.int32, (1, TAU), 1)   # lane iota
        else:
            idx = lax.broadcasted_iota(jnp.int32, (V, 1), 0)     # sublane iota

        hit = None
        for m in range(num_masks):  # static unroll: num_masks is compile-time
            start = params_ref[b, 2 * m]
            length = params_ref[b, 2 * m + 1]
            band = (idx >= start) & (idx < start + length)
            hit = band if hit is None else (hit | band)

        # hit is (1, TAU) or (V, 1); scalar zero avoids a (V, TAU) zeros operand.
        o_ref[...] = jnp.where(hit, jnp.zeros((), x.dtype), x)

    return kernel


def _make_shift_kernel(batched):
    """Circular shift along the time (lane) axis via a dynamic XLU rotate.

    pltpu.roll follows np.roll semantics: out[:, j] = x[:, (j - shift) % TAU].
    The wrapper passes shift = (TAU - idx) % TAU so this equals the reference
    torch.cat([x[:, idx:], x[:, :idx]], dim=1).
    """
    def kernel(shift_ref, x_ref, o_ref):
        b = pl.program_id(0) if batched else 0
        o_ref[...] = pltpu.roll(x_ref[...], shift_ref[b], axis=1)

    return kernel


# ----------------------------------------------------------------------------
# Cached, jitted pallas_call wrappers
# ----------------------------------------------------------------------------
@functools.lru_cache(maxsize=None)
def _mask_call_single(V, TAU, dtype, mode, num_masks, donate):
    kernel = _make_mask_kernel(mode, num_masks, batched=False)
    fn = pl.pallas_call(
        kernel,
        out_shape=jax.ShapeDtypeStruct((V, TAU), dtype),
        # Gridless: no 1-point grid overhead; params in SMEM, data in VMEM.
        in_specs=[pl.BlockSpec(memory_space=pltpu.MemorySpace.SMEM),
                  pl.BlockSpec(memory_space=pltpu.MemorySpace.VMEM)],
        out_specs=pl.BlockSpec(memory_space=pltpu.MemorySpace.VMEM),
        input_output_aliases=({1: 0} if donate else {}),
    )
    return jax.jit(fn, donate_argnums=((1,) if donate else ()))


@functools.lru_cache(maxsize=None)
def _mask_call_batched(B, V, TAU, dtype, mode, num_masks, donate):
    kernel = _make_mask_kernel(mode, num_masks, batched=True)
    fn = pl.pallas_call(
        kernel,
        out_shape=jax.ShapeDtypeStruct((B, V, TAU), dtype),
        grid_spec=pltpu.PrefetchScalarGridSpec(
            num_scalar_prefetch=1,
            grid=(B,),
            in_specs=[pl.BlockSpec((None, V, TAU), lambda b, p: (b, 0, 0))],
            out_specs=pl.BlockSpec((None, V, TAU), lambda b, p: (b, 0, 0)),
        ),
        # Aliased tensor input index counts the scalar-prefetch operand -> 1.
        input_output_aliases=({1: 0} if donate else {}),
        # Parallel batch axis: shards grid steps across v7x's two TensorCores.
        compiler_params=pltpu.CompilerParams(dimension_semantics=("parallel",)),
    )
    return jax.jit(fn, donate_argnums=((1,) if donate else ()))


@functools.lru_cache(maxsize=None)
def _shift_call_single(V, TAU, dtype, donate):
    fn = pl.pallas_call(
        _make_shift_kernel(batched=False),
        out_shape=jax.ShapeDtypeStruct((V, TAU), dtype),
        in_specs=[pl.BlockSpec(memory_space=pltpu.MemorySpace.SMEM),
                  pl.BlockSpec(memory_space=pltpu.MemorySpace.VMEM)],
        out_specs=pl.BlockSpec(memory_space=pltpu.MemorySpace.VMEM),
        input_output_aliases=({1: 0} if donate else {}),
    )
    return jax.jit(fn, donate_argnums=((1,) if donate else ()))


@functools.lru_cache(maxsize=None)
def _shift_call_batched(B, V, TAU, dtype, donate):
    # NOTE: the shift block keeps the full TAU extent (pltpu.roll cannot rotate
    # across tile boundaries); only the batch axis is gridded.
    fn = pl.pallas_call(
        _make_shift_kernel(batched=True),
        out_shape=jax.ShapeDtypeStruct((B, V, TAU), dtype),
        grid_spec=pltpu.PrefetchScalarGridSpec(
            num_scalar_prefetch=1,
            grid=(B,),
            in_specs=[pl.BlockSpec((None, V, TAU), lambda b, s: (b, 0, 0))],
            out_specs=pl.BlockSpec((None, V, TAU), lambda b, s: (b, 0, 0)),
        ),
        input_output_aliases=({1: 0} if donate else {}),
        compiler_params=pltpu.CompilerParams(dimension_semantics=("parallel",)),
    )
    return jax.jit(fn, donate_argnums=((1,) if donate else ()))


# ----------------------------------------------------------------------------
# Functional wrappers
# ----------------------------------------------------------------------------
def apply_masks(x, starts_and_lengths, mode, *, donate=False):
    """x: (V, TAU). Apply all (start, length) bands in ONE fused gridless launch."""
    pairs = [(int(s), int(l)) for s, l in starts_and_lengths]
    if not pairs or all(l <= 0 for _, l in pairs):
        return x  # every mask is empty (or no masks) -> skip the launch
    V, TAU = x.shape
    params = jnp.asarray(np.asarray(pairs, dtype=np.int32).reshape(1, -1))
    return _mask_call_single(V, TAU, x.dtype, mode, len(pairs), donate)(params, x)


def apply_masks_batched(x, starts_and_lengths, mode, *, donate=False):
    """x: (B, V, TAU); starts_and_lengths: (B, num_masks, 2) of (start, length).

    One pallas_call covers the whole batch; one tiny H2D copy stages all params.
    """
    params_np = np.asarray(starts_and_lengths, dtype=np.int32)
    B, V, TAU = x.shape
    assert params_np.ndim == 3 and params_np.shape[0] == B and params_np.shape[2] == 2
    num_masks = params_np.shape[1]
    if num_masks == 0 or np.all(params_np[..., 1] <= 0):
        return x
    params = jnp.asarray(params_np.reshape(B, 2 * num_masks))
    return _mask_call_batched(B, V, TAU, x.dtype, mode, num_masks, donate)(params, x)


def circular_shift(x, idx, *, donate=False):
    """out[:, j] = x[:, (j + idx) % TAU]  (== cat([x[:, idx:], x[:, :idx]]))."""
    V, TAU = x.shape
    idx = int(idx) % TAU
    if idx == 0:
        return x  # identity -> skip the launch
    shift = jnp.asarray([(TAU - idx) % TAU], dtype=jnp.int32)
    return _shift_call_single(V, TAU, x.dtype, donate)(shift, x)


def circular_shift_batched(x, idxs, *, donate=False):
    """x: (B, V, TAU); idxs: (B,) per-sample shift indices. One launch."""
    B, V, TAU = x.shape
    idxs = np.asarray(idxs, dtype=np.int64) % TAU
    if np.all(idxs == 0):
        return x
    shifts = jnp.asarray(((TAU - idxs) % TAU).astype(np.int32))
    return _shift_call_batched(B, V, TAU, x.dtype, donate)(shifts, x)


# ----------------------------------------------------------------------------
# Module wrapper
# ----------------------------------------------------------------------------
class Augment:
    """JAX/Pallas port of DEX-TTS `Augment` (shift / time-mask / freq-mask).

    The reference module draws its mask/shift parameters from host-side
    `np.random` / `random`; we mirror that with deterministically-seeded host
    RNGs (glue), while the actual masking / shifting runs in Pallas.
    `__call__` is the faithful single-sample forward; `forward_batch` is the
    batched fast path (one kernel launch per batch).
    """

    def __init__(self, freq_mask_num=1, time_mask_num=1,
                 freq_mask=False, time_mask=True, seed=0):
        self.freq_mask_num = freq_mask_num
        self.time_mask_num = time_mask_num
        self.freq_mask = freq_mask
        self.time_mask = time_mask
        self._np_rng = np.random.RandomState(seed)
        self._py_rng = random.Random(seed)

    # --- host-side parameter draws (mirror the reference's RNG usage) ---
    def _draw_time(self, tau, time_mask_para):
        pairs = []
        for _ in range(self.time_mask_num):
            t = int(self._np_rng.uniform(low=0.0, high=time_mask_para))
            t = min(t, tau)  # guard randint range if para > tau
            t0 = self._py_rng.randint(0, tau - t)
            pairs.append((t0, t))
        return pairs

    def _draw_freq(self, v, freq_mask_para):
        pairs = []
        for _ in range(self.freq_mask_num):
            f = int(self._np_rng.uniform(low=0.0, high=freq_mask_para))
            f = min(f, v)
            f0 = self._py_rng.randint(0, v - f)
            pairs.append((f0, f))
        return pairs

    def _draw_shift(self, tau):
        # reference: idx = int(np.random.uniform(t))  (quirk: low=t, high=1.0)
        return int(self._np_rng.uniform(tau)) % tau

    # --- faithful single-sample forward ---
    def __call__(self, x, aug_type, time_mask_para=27, freq_mask_para=30,
                 donate=False):
        if x.ndim != 2:
            x = x[None]  # mirrors reference unsqueeze(0) (1-D -> 2-D)
        v, tau = x.shape

        if 'T' in aug_type:
            x = apply_masks(x, self._draw_time(tau, time_mask_para),
                            MODE_TIME, donate=donate)
        elif 'F' in aug_type:
            x = apply_masks(x, self._draw_freq(v, freq_mask_para),
                            MODE_FREQ, donate=donate)
        elif 'S' in aug_type:
            x = circular_shift(x, self._draw_shift(tau), donate=donate)

        # reference: x.squeeze(1) -> drop axis 1 iff its size is 1
        if x.ndim >= 2 and x.shape[1] == 1:
            x = jnp.squeeze(x, axis=1)
        return x

    # --- batched fast path: one kernel launch for the whole (B, V, TAU) batch ---
    def forward_batch(self, x, aug_type, time_mask_para=27, freq_mask_para=30,
                      donate=False):
        B, v, tau = x.shape
        if 'T' in aug_type:
            params = [self._draw_time(tau, time_mask_para) for _ in range(B)]
            return apply_masks_batched(x, params, MODE_TIME, donate=donate)
        elif 'F' in aug_type:
            params = [self._draw_freq(v, freq_mask_para) for _ in range(B)]
            return apply_masks_batched(x, params, MODE_FREQ, donate=donate)
        elif 'S' in aug_type:
            idxs = [self._draw_shift(tau) for _ in range(B)]
            return circular_shift_batched(x, idxs, donate=donate)
        return x


if __name__ == "__main__":
    key = jax.random.PRNGKey(0)
    V, TAU, B = 80, 128, 4  # mel_bins x time_frames spectrogram, small batch
    kx, kb = jax.random.split(key)
    x = jax.random.normal(kx, (V, TAU), dtype=jnp.float32)
    xb = jax.random.normal(kb, (B, V, TAU), dtype=jnp.float32)

    # --- single-sample (gridless) kernel checks with fixed parameters ---
    y_t = apply_masks(x, [(10, 7)], MODE_TIME)
    y_f = apply_masks(x, [(5, 12)], MODE_FREQ)
    y_tt = apply_masks(x, [(10, 7), (100, 20)], MODE_TIME)  # fused two masks
    y_s = circular_shift(x, 33)
    y_s0 = circular_shift(x, 0)
    jax.block_until_ready((y_t, y_f, y_tt, y_s))

    xn = np.asarray(x)
    ref_t = xn.copy(); ref_t[:, 10:17] = 0
    ref_f = xn.copy(); ref_f[5:17, :] = 0
    ref_tt = ref_t.copy(); ref_tt[:, 100:120] = 0
    ref_s = np.concatenate([xn[:, 33:], xn[:, :33]], axis=1)
    assert np.array_equal(np.asarray(y_t), ref_t)
    assert np.array_equal(np.asarray(y_f), ref_f)
    assert np.array_equal(np.asarray(y_tt), ref_tt)
    assert np.array_equal(np.asarray(y_s), ref_s)       # roll is exact (no arith)
    assert np.array_equal(np.asarray(y_s0), xn)

    # --- batched kernel checks: ONE launch covers all B samples ---
    t_params = [[(5 * b, 3 + b)] for b in range(B)]
    f_params = [[(2 * b, 4 + b)] for b in range(B)]
    idxs = [0, 1, 17, 127]
    yb_t = apply_masks_batched(xb, t_params, MODE_TIME)
    yb_f = apply_masks_batched(xb, f_params, MODE_FREQ)
    yb_s = circular_shift_batched(xb, idxs)
    jax.block_until_ready((yb_t, yb_f, yb_s))

    xbn = np.asarray(xb)
    ref_bt = xbn.copy(); ref_bf = xbn.copy(); ref_bs = np.empty_like(xbn)
    for b in range(B):
        s, l = t_params[b][0]; ref_bt[b, :, s:s + l] = 0
        s, l = f_params[b][0]; ref_bf[b, s:s + l, :] = 0
        ref_bs[b] = np.concatenate([xbn[b, :, idxs[b]:], xbn[b, :, :idxs[b]]], axis=1)
    assert np.array_equal(np.asarray(yb_t), ref_bt)
    assert np.array_equal(np.asarray(yb_f), ref_bf)
    assert np.array_equal(np.asarray(yb_s), ref_bs)

    # --- donated (buffer-reusing) call on a throwaway copy ---
    x_d = jnp.array(xn)  # fresh buffer we are allowed to donate
    y_d = apply_masks(x_d, [(10, 7)], MODE_TIME, donate=True)
    assert np.array_equal(np.asarray(y_d), ref_t)
    del x_d  # donated: must not be reused

    # --- module-style forwards (deterministic host RNG for parameters) ---
    aug = Augment()
    out_T = jax.block_until_ready(aug(x, aug_type='T'))
    out_F = jax.block_until_ready(aug(x, aug_type='F'))
    out_S = jax.block_until_ready(aug(x, aug_type='S'))
    assert out_T.shape == (V, TAU) and out_F.shape == (V, TAU) and out_S.shape == (V, TAU)

    out_B = jax.block_until_ready(aug.forward_batch(xb, aug_type='T'))
    assert out_B.shape == (B, V, TAU)

    print("KERNEL_OK")
</pallas_src>

<mosaic_0001>
module attributes {stable_mosaic.version = 11 : i64} {
  func.func @kernel(%arg0: memref<1x2xi32, #tpu.memory_space<smem>>, %arg1: memref<80x128xf32, #tpu.memory_space<vmem>>, %arg2: memref<80x128xf32, #tpu.memory_space<vmem>>) attributes {dimension_semantics = [], scalar_prefetch = 0 : i64, scratch_operands = 0 : i64, tpu.core_type = #tpu.core_type<tc>} {
    %c0 = arith.constant 0 : index
    %c0_0 = arith.constant 0 : index
    %0 = vector.load %arg1[%c0, %c0_0] : memref<80x128xf32, #tpu.memory_space<vmem>>, vector<80x128xf32>
    %1 = tpu.iota {dimensions = array<i32: 1>} : vector<1x128xi32>
    %c0_1 = arith.constant 0 : index
    %c0_2 = arith.constant 0 : index
    %2 = memref.load %arg0[%c0_1, %c0_2] : memref<1x2xi32, #tpu.memory_space<smem>>
    %c0_3 = arith.constant 0 : index
    %c1 = arith.constant 1 : index
    %3 = memref.load %arg0[%c0_3, %c1] : memref<1x2xi32, #tpu.memory_space<smem>>
    %4 = vector.broadcast %2 : i32 to vector<1x128xi32>
    %5 = arith.cmpi sge, %1, %4 : vector<1x128xi32>
    %6 = arith.addi %2, %3 : i32
    %7 = vector.broadcast %6 : i32 to vector<1x128xi32>
    %8 = arith.cmpi slt, %1, %7 : vector<1x128xi32>
    %9 = arith.andi %5, %8 : vector<1x128xi1>
    %cst = arith.constant 0.000000e+00 : f32
    %10 = vector.shape_cast %9 : vector<1x128xi1> to vector<1x128xi1>
    %11 = vector.broadcast %10 : vector<1x128xi1> to vector<80x128xi1>
    %12 = vector.broadcast %cst : f32 to vector<80x128xf32>
    %13 = arith.select %11, %12, %0 : vector<80x128xi1>, vector<80x128xf32>
    %c0_4 = arith.constant 0 : index
    %c0_5 = arith.constant 0 : index
    %14 = vector.load %arg2[%c0_4, %c0_5] : memref<80x128xf32, #tpu.memory_space<vmem>>, vector<80x128xf32>
    tpu.vector_store %arg2[%c0_4, %c0_5], %13 {strides = array<i32>} : memref<80x128xf32, #tpu.memory_space<vmem>>, vector<80x128xf32>,
    return
  }
}

</mosaic_0001>

<llo_original>
// kernel: tpu_custom_call.1
$region0: #{tpu_custom_call.1}
  #allocation0 [shape = 'u32[]', space=smem, size = 0x4, offset = 0x4, fixed_abs, tag = 'smem constant byte address 0x4 - core index']
  #allocation1 [shape = 'u32[144,128]{1,0:T(1,128)}', space=vmem, size = 0x12000, scoped, tag = 'internal scratch']
  %s0 = inlined_call_operand.hbm [shape: s32[1,2], index: 0, kind: input, shape index: {}]
  %s1 = inlined_call_operand.hbm [shape: f32[80,128], index: 1, kind: input, shape index: {}]
  %s2 = inlined_call_operand.hbm [shape: f32[80,128], index: 2, kind: output, shape index: {}]
  %s3 = sld [smem:[#allocation0]]
  $region26: #{tpu_custom_call.1} parent=0
    _
  %s5 = ssub.s32 1, %s3
  %s6 = scalar_select 0, %s5, %s3
  $region1: #{tpu_custom_call.1} parent=0
    #allocation2 [shape = 'u8[512]{0}', space=smem, size = 0x200, scoped, tag = 'input window, operand 0, single buffered']
    #allocation3 [shape = 's32[1]{0}', space=sflag, size = 0x4, scoped, tag = 'scoped memory for tpu_custom_call.1']
    #allocation4 [shape = 's32[1]{0}', space=sflag, size = 0x4, scoped, tag = 'scoped memory for tpu_custom_call.1']
    #allocation5 [shape = 's32[1]{0}', space=sflag, size = 0x4, scoped, tag = 'scoped memory for tpu_custom_call.1']
    #allocation6 [shape = 'u8[40960]{0}', space=vmem, size = 0xa000, scoped, tag = 'input window, operand 1, single buffered']
    #allocation7 [shape = 'u8[40960]{0}', space=vmem, size = 0xa000, scoped, tag = 'output window, operand 0, single buffered']
    %7 = vsyncpa [#allocation5], 0
    %8 = vsyncpa [#allocation3], 0
    %9 = vsyncpa [#allocation4], 0
    // Predicated region
    $region2: #{tpu_custom_call.1} parent=1 // pred_check
      _
    $region3: #{tpu_custom_call.1} parent=1 // pred_check_branch
      %11 = sbr.rel (0) target = $region5
    $region4: #{tpu_custom_call.1} parent=1 // pred_region
      %s13 = ssub.s32 16, 16
      %14 = vsyncadd [#allocation5], %s13
      %17 = dma.hbm_to_smem %s0, 16, [#allocation2], [#allocation5]
    $region5: #{tpu_custom_call.1} parent=1 // pred_fallthru
      _
    // Predicated region
    $region6: #{tpu_custom_call.1} parent=1 // pred_check
      _
    $region7: #{tpu_custom_call.1} parent=1 // pred_check_branch
      %19 = sbr.rel (0) target = $region9
    $region8: #{tpu_custom_call.1} parent=1 // pred_region
      %s21 = ssub.s32 1280, 1280
      %22 = vsyncadd [#allocation3], %s21
      %s23 = sshll.u32 [#allocation6], 4
      %s24 = int_to_ptr.vmem [resolvable:$true] %s23
      %29 = dma.hbm_to_vmem [thread:$0]  %s1, 1280, %s24, [#allocation3], 128, 128, 8
    $region9: #{tpu_custom_call.1} parent=1 // pred_fallthru
      _
    // Predicated region
    $region10: #{tpu_custom_call.1} parent=1 // pred_check
      _
    $region11: #{tpu_custom_call.1} parent=1 // pred_check_branch
      %31 = sbr.rel (0) target = $region13
    $region12: #{tpu_custom_call.1} parent=1 // pred_region
      %32 = dma.done [#allocation5], 16
    $region13: #{tpu_custom_call.1} parent=1 // pred_fallthru
      _
    // Predicated region
    $region14: #{tpu_custom_call.1} parent=1 // pred_check
      _
    $region15: #{tpu_custom_call.1} parent=1 // pred_check_branch
      %34 = sbr.rel (0) target = $region17
    $region16: #{tpu_custom_call.1} parent=1 // pred_region
      %35 = dma.done [#allocation3], 1280
    $region17: #{tpu_custom_call.1} parent=1 // pred_fallthru
      _
    %36 = sfence
    %v37 = vld [vmem:[#allocation6] sm:$0xff]
    %v38 = vld [vmem:[#allocation6 + $0x8] sm:$0xff]
    %v39 = vld [vmem:[#allocation6 + $0x10] sm:$0xff]
    %v40 = vld [vmem:[#allocation6 + $0x18] sm:$0xff]
    %v41 = vld [vmem:[#allocation6 + $0x20] sm:$0xff]
    %v42 = vld [vmem:[#allocation6 + $0x28] sm:$0xff]
    %v43 = vld [vmem:[#allocation6 + $0x30] sm:$0xff]
    %v44 = vld [vmem:[#allocation6 + $0x38] sm:$0xff]
    %v45 = vld [vmem:[#allocation6 + $0x40] sm:$0xff]
    %v46 = vld [vmem:[#allocation6 + $0x48] sm:$0xff]
    %v47 = vlaneseq
    %v48 = vand.u32 %v47, 127
    %s49 = sld [smem:[#allocation2]]
    %s50 = sld [smem:[#allocation2 + $0x1]]
    %v51 = vstv %s49
    %vm52 = vcmp.ge.s32.totalorder %v48, %v51
    %s53 = sadd.s32 %s49, %s50
    %v54 = vstv %s53
    %vm55 = vcmp.lt.s32.totalorder %v48, %v54
    %vm56 = vmand %vm52, %vm55
    %v57 = vsel %vm56, 1, 0
    %vm58 = vcmp.eq.s32.totalorder %v57, 1
    %v59 = vsel %vm58, 0.0, %v37
    %v60 = vsel %vm58, 0.0, %v38
    %v61 = vsel %vm58, 0.0, %v39
    %v62 = vsel %vm58, 0.0, %v40
    %v63 = vsel %vm58, 0.0, %v41
    %v64 = vsel %vm58, 0.0, %v42
    %v65 = vsel %vm58, 0.0, %v43
    %v66 = vsel %vm58, 0.0, %v44
    %v67 = vsel %vm58, 0.0, %v45
    %v68 = vsel %vm58, 0.0, %v46
    %69 = vst [vmem:[#allocation7] sm:$0xff] %v59
    %70 = vst [vmem:[#allocation7 + $0x8] sm:$0xff] %v60
    %71 = vst [vmem:[#allocation7 + $0x10] sm:$0xff] %v61
    %72 = vst [vmem:[#allocation7 + $0x18] sm:$0xff] %v62
    %73 = vst [vmem:[#allocation7 + $0x20] sm:$0xff] %v63
    %74 = vst [vmem:[#allocation7 + $0x28] sm:$0xff] %v64
    %75 = vst [vmem:[#allocation7 + $0x30] sm:$0xff] %v65
    %76 = vst [vmem:[#allocation7 + $0x38] sm:$0xff] %v66
    %77 = vst [vmem:[#allocation7 + $0x40] sm:$0xff] %v67
    %78 = vst [vmem:[#allocation7 + $0x48] sm:$0xff] %v68
    // Predicated region
    $region18: #{tpu_custom_call.1} parent=1 // pred_check
      _
    $region19: #{tpu_custom_call.1} parent=1 // pred_check_branch
      %80 = sbr.rel (0) target = $region21
    $region20: #{tpu_custom_call.1} parent=1 // pred_region
      %s82 = ssub.s32 1280, 1280
      %83 = vsyncadd [#allocation4], %s82
      %s84 = sshll.u32 [#allocation7], 4
      %s85 = int_to_ptr.vmem [resolvable:$true] %s84
      %90 = dma.vmem_to_hbm [thread:$0]  %s85, 1280, %s2, [#allocation4], 128, 128, 8
    $region21: #{tpu_custom_call.1} parent=1 // pred_fallthru
      _
    // Predicated region
    $region22: #{tpu_custom_call.1} parent=1 // pred_check
      _
    $region23: #{tpu_custom_call.1} parent=1 // pred_check_branch
      %92 = sbr.rel (0) target = $region25
    $region24: #{tpu_custom_call.1} parent=1 // pred_region
      %93 = dma.done [#allocation4], 1280
    $region25: #{tpu_custom_call.1} parent=1 // pred_fallthru
      _
    %94 = vsyncpa [#allocation3], 1
    %95 = vsyncpa [#allocation4], 1
    %96 = vsyncpa [#allocation5], 1

</llo_original>
